<compile_context>
chip_gen: v7x
topology: tpu7x:2x2x1
jax: 0.10.0
libtpu: 0.0.40
codegen_flags: <defaults>
</compile_context>

<pallas_src>
import math

import jax
import jax.numpy as jnp
from jax.experimental import pallas as pl
from jax.experimental.pallas import tpu as pltpu

_LANE = 128
_MIN_GRID_STEPS = 4  # >= 2 * num_tensorcores on v7x; restores pipeline overlap everywhere


def _cdiv(a: int, b: int) -> int:
    return -(-a // b)


def _round_up(x: int, m: int) -> int:
    return _cdiv(x, m) * m


def _vmem_capacity_bytes(default: int = 64 * 1024 * 1024) -> int:
    """Per-core VMEM capacity; conservative (v7x) fallback if the query fails."""
    try:
        info = pltpu.get_tpu_info()
        cap = getattr(info, "vmem_capacity_bytes", None)
        if cap:
            return int(cap)
    except Exception:
        pass
    return default


def _concat_rows_kernel(*refs):
    """refs = (*input_refs, out_ref); all are (TILE_R, width) VMEM tiles.

    Inputs whose output offset and width are 128-aligned are stored directly
    (unmasked lane-dense vst). Runs of unaligned/narrow inputs are assembled in
    vregs with jnp.concatenate and written with one store per run.
    """
    in_refs = refs[:-1]
    out_ref = refs[-1]

    state = {"group": [], "group_off": 0, "group_w": 0}

    def _flush():
        if not state["group"]:
            return
        vals = [r[...] for r in state["group"]]
        val = vals[0] if len(vals) == 1 else jnp.concatenate(vals, axis=-1)
        off, w = state["group_off"], state["group_w"]
        out_ref[:, off:off + w] = val
        state["group"] = []
        state["group_w"] = 0

    off = 0
    for r in in_refs:
        w = r.shape[-1]
        if off % _LANE == 0 and w % _LANE == 0:
            _flush()
            out_ref[:, off:off + w] = r[...]  # aligned: direct unmasked store
        else:
            if not state["group"]:
                state["group_off"] = off
            state["group"].append(r)
            state["group_w"] += w
        off += w
    _flush()


def pallas_concat(
    inputs,
    dim: int = -1,
    *,
    min_bytes_for_pallas: int = 16 << 20,
    max_rows_per_tile: int = 8192,
    max_out_tile_bytes: int = 4 << 20,
):
    """Concatenate a dict of arrays along `dim`, sorted by key.

    Matches merlin.models.torch.transforms.agg.Concat.forward semantics.
    """
    names = sorted(inputs.keys())
    tensors = [jnp.asarray(inputs[n]) for n in names]

    ndim = tensors[0].ndim
    axis = dim % ndim

    # Shape / dtype validation (same semantics as the torch module + torch.cat).
    ref_shape = tensors[0].shape
    for t in tensors:
        if (
            t.ndim != ndim
            or t.shape[:axis] != ref_shape[:axis]
            or t.shape[axis + 1:] != ref_shape[axis + 1:]
        ):
            raise RuntimeError(
                "Input tensor shapes don't match for concatenation",
                "along the specified dimension.",
            )
        if t.dtype != tensors[0].dtype:
            raise RuntimeError("Input tensor dtypes must match for concatenation.")

    dtype = tensors[0].dtype

    if len(tensors) == 1:
        return tensors[0]

    if axis != ndim - 1:
        # Non-last-axis concat: XLA's native concat is already a single-pass
        # copy; moveaxis round-trips would be 2-3x the HBM traffic.
        # TODO(synk): in-kernel sublane-axis concat for the dim=-2 case.
        return jnp.concatenate(tensors, axis=axis)

    # ---- last-dim concat: Pallas tiled-copy path ----
    widths = [t.shape[-1] for t in tensors]
    out_last = sum(widths)
    lead_shape = tensors[0].shape[:-1]
    rows = math.prod(lead_shape) if lead_shape else 1
    itemsize = jnp.dtype(dtype).itemsize

    # Fast path: below the crossover, pallas_call launch + pipeline
    # prologue/epilogue dominates any bandwidth win.
    total_bytes = 2 * rows * out_last * itemsize  # read + write
    if total_bytes < min_bytes_for_pallas:
        return jnp.concatenate(tensors, axis=-1)

    # Flatten leading dims (view-only reshape; last dim unchanged).
    flat = [t.reshape(rows, w) for t, w in zip(tensors, widths)]

    # --- generation-aware VMEM budgets ---
    vmem_cap = _vmem_capacity_bytes()               # 64 MiB v7x, 128 MiB v5e/v6e
    vmem_limit = min(vmem_cap * 3 // 4, 64 << 20)   # 48 MiB v7x, 64 MiB v5e/v6e
    vmem_budget = vmem_limit * 3 // 4               # live-tile budget

    # Lane-padded per-row footprint: every (tile_r, w) tile occupies
    # round_up(w, 128) lanes of VMEM regardless of logical width, and each
    # input/output block is double-buffered by the pipeline.
    padded_cols = sum(_round_up(w, _LANE) for w in widths) + _round_up(out_last, _LANE)
    padded_row_bytes = 2 * padded_cols * itemsize

    sublane_pack = max(8, 32 // itemsize)  # 8 f32 / 16 bf16 / 32 int8

    tile_r = vmem_budget // padded_row_bytes
    tile_r = min(tile_r, max_rows_per_tile)
    # Per-step output-bytes target (~4 MiB) amortizes the ~0.35us/step overhead
    # without oversizing beyond the HBM roofline plateau.
    tile_r = min(tile_r, max(1, max_out_tile_bytes // max(1, out_last * itemsize)))
    # Guarantee >= _MIN_GRID_STEPS grid steps (v7x TC sharding + pipeline overlap).
    tile_r = min(tile_r, _cdiv(rows, _MIN_GRID_STEPS))
    # Round to the sublane pack of the dtype.
    tile_r = max(sublane_pack, (tile_r // sublane_pack) * sublane_pack)

    grid = (_cdiv(rows, tile_r),)

    out2d = pl.pallas_call(
        _concat_rows_kernel,
        out_shape=jax.ShapeDtypeStruct((rows, out_last), dtype),
        grid=grid,
        in_specs=[
            pl.BlockSpec((tile_r, w), lambda i: (i, 0)) for w in widths
        ],
        out_specs=pl.BlockSpec((tile_r, out_last), lambda i: (i, 0)),
        compiler_params=pltpu.CompilerParams(
            dimension_semantics=("parallel",),  # shard rows over both TCs on v7x
            vmem_limit_bytes=vmem_limit,
        ),
    )(*flat)

    return out2d.reshape(lead_shape + (out_last,))


if __name__ == "__main__":
    key = jax.random.PRNGKey(0)
    k1, k2, k3, k4, k5, k6, k7 = jax.random.split(key, 7)

    # --- Case 1: Pallas tiled path, all-narrow (single vreg-assembled group),
    #     partial edge block, >=4 grid steps enforced. ---
    batch = 200
    inputs = {
        "feature_b": jax.random.normal(k2, (batch, 16), dtype=jnp.float32),
        "feature_a": jax.random.normal(k1, (batch, 8), dtype=jnp.float32),
        "feature_c": jax.random.normal(k3, (batch, 32), dtype=jnp.float32),
        "feature_d": jax.random.normal(k4, (batch, 128), dtype=jnp.float32),
    }
    out = pallas_concat(inputs, dim=-1, min_bytes_for_pallas=0, max_rows_per_tile=64)
    out = jax.block_until_ready(out)
    ref = jnp.concatenate([inputs[n] for n in sorted(inputs.keys())], axis=-1)
    assert out.shape == (batch, 8 + 16 + 32 + 128), out.shape
    assert jnp.allclose(out, ref), "mismatch vs reference concat (pallas, grouped path)"

    # --- Case 2: Pallas path exercising the 128-aligned direct-store branch
    #     (widths 128, 256 aligned; 40-wide tail goes through the group path). ---
    batch2 = 64
    inputs2 = {
        "a_emb": jax.random.normal(k5, (batch2, 128), dtype=jnp.float32),
        "b_emb": jax.random.normal(k6, (batch2, 256), dtype=jnp.float32),
        "c_small": jax.random.normal(k7, (batch2, 40), dtype=jnp.float32),
    }
    out2 = jax.block_until_ready(
        pallas_concat(inputs2, dim=-1, min_bytes_for_pallas=0, max_rows_per_tile=32)
    )
    ref2 = jnp.concatenate([inputs2[n] for n in sorted(inputs2.keys())], axis=-1)
    assert out2.shape == (batch2, 128 + 256 + 40), out2.shape
    assert jnp.allclose(out2, ref2), "mismatch vs reference concat (pallas, aligned path)"

    # --- Case 3: default heuristics (tiny dict -> XLA fast path), same semantics ---
    small_inputs = {
        "feature_b": jax.random.normal(k2, (2, 16), dtype=jnp.float32),
        "feature_a": jax.random.normal(k1, (2, 8), dtype=jnp.float32),
    }
    out_small = jax.block_until_ready(pallas_concat(small_inputs, dim=-1))
    ref_small = jnp.concatenate(
        [small_inputs[n] for n in sorted(small_inputs.keys())], axis=-1
    )
    assert out_small.shape == (2, 24), out_small.shape
    assert jnp.allclose(out_small, ref_small), "mismatch vs reference (fast path)"

    # --- Case 4: non-last-dim concat (delegated to XLA single-pass concat) ---
    out_dim0 = jax.block_until_ready(pallas_concat(small_inputs, dim=0)) \
        if False else None  # dim=0 requires equal trailing dims; use matching shapes below
    eq_inputs = {
        "x2": jax.random.normal(k2, (3, 8), dtype=jnp.float32),
        "x1": jax.random.normal(k1, (2, 8), dtype=jnp.float32),
    }
    out_d0 = jax.block_until_ready(pallas_concat(eq_inputs, dim=0))
    ref_d0 = jnp.concatenate([eq_inputs[n] for n in sorted(eq_inputs.keys())], axis=0)
    assert out_d0.shape == (5, 8) and jnp.allclose(out_d0, ref_d0)

    print("KERNEL_OK")
</pallas_src>

<mosaic_0001>
module attributes {stable_mosaic.version = 11 : i64} {
  func.func @_concat_rows_kernel(%arg0: i32, %arg1: memref<48x8xf32, #tpu.memory_space<vmem>>, %arg2: memref<48x16xf32, #tpu.memory_space<vmem>>, %arg3: memref<48x32xf32, #tpu.memory_space<vmem>>, %arg4: memref<48x128xf32, #tpu.memory_space<vmem>>, %arg5: memref<48x184xf32, #tpu.memory_space<vmem>>) attributes {dimension_semantics = [#tpu.dimension_semantics<parallel>], iteration_bounds = array<i64: 5>, scalar_prefetch = 0 : i64, scratch_operands = 0 : i64, tpu.core_type = #tpu.core_type<tc>, window_params = [{transform_indices = @transform_0, window_bounds = array<i64: 48, 8>}, {transform_indices = @transform_1, window_bounds = array<i64: 48, 16>}, {transform_indices = @transform_2, window_bounds = array<i64: 48, 32>}, {transform_indices = @transform_3, window_bounds = array<i64: 48, 128>}, {transform_indices = @transform_4, window_bounds = array<i64: 48, 184>}]} {
    %c0 = arith.constant 0 : index
    %c0_0 = arith.constant 0 : index
    %0 = vector.load %arg1[%c0, %c0_0] : memref<48x8xf32, #tpu.memory_space<vmem>>, vector<48x8xf32>
    %c0_1 = arith.constant 0 : index
    %c0_2 = arith.constant 0 : index
    %1 = vector.load %arg2[%c0_1, %c0_2] : memref<48x16xf32, #tpu.memory_space<vmem>>, vector<48x16xf32>
    %c0_3 = arith.constant 0 : index
    %c0_4 = arith.constant 0 : index
    %2 = vector.load %arg3[%c0_3, %c0_4] : memref<48x32xf32, #tpu.memory_space<vmem>>, vector<48x32xf32>
    %c0_5 = arith.constant 0 : index
    %c0_6 = arith.constant 0 : index
    %3 = vector.load %arg4[%c0_5, %c0_6] : memref<48x128xf32, #tpu.memory_space<vmem>>, vector<48x128xf32>
    %4 = tpu.concatenate %0, %1, %2, %3 in 1 : vector<48x8xf32>, vector<48x16xf32>, vector<48x32xf32>, vector<48x128xf32> -> vector<48x184xf32>
    %c0_7 = arith.constant 0 : index
    %c0_8 = arith.constant 0 : index
    %5 = vector.load %arg5[%c0_7, %c0_8] : memref<48x184xf32, #tpu.memory_space<vmem>>, vector<48x184xf32>
    tpu.vector_store %arg5[%c0_7, %c0_8], %4 {strides = array<i32>} : memref<48x184xf32, #tpu.memory_space<vmem>>, vector<48x184xf32>,
    return
  }
  func.func @transform_0(%arg0: i32) -> (i32, i32) {
    %c0_i32 = arith.constant 0 : i32
    %c0_i32_0 = arith.constant 0 : i32
    return %arg0, %c0_i32 : i32, i32
  }
  func.func @transform_1(%arg0: i32) -> (i32, i32) {
    %c0_i32 = arith.constant 0 : i32
    %c0_i32_0 = arith.constant 0 : i32
    return %arg0, %c0_i32 : i32, i32
  }
  func.func @transform_2(%arg0: i32) -> (i32, i32) {
    %c0_i32 = arith.constant 0 : i32
    %c0_i32_0 = arith.constant 0 : i32
    return %arg0, %c0_i32 : i32, i32
  }
  func.func @transform_3(%arg0: i32) -> (i32, i32) {
    %c0_i32 = arith.constant 0 : i32
    %c0_i32_0 = arith.constant 0 : i32
    return %arg0, %c0_i32 : i32, i32
  }
  func.func @transform_4(%arg0: i32) -> (i32, i32) {
    %c0_i32 = arith.constant 0 : i32
    %c0_i32_0 = arith.constant 0 : i32
    return %arg0, %c0_i32 : i32, i32
  }
}

</mosaic_0001>

<llo_original>
// kernel: tpu_custom_call.1
$region0: #{tpu_custom_call.1}
  #allocation0 [shape = 'u32[]', space=smem, size = 0x4, offset = 0x4, fixed_abs, tag = 'smem constant byte address 0x4 - core index']
  #allocation1 [shape = 'u32[144,128]{1,0:T(1,128)}', space=vmem, size = 0x12000, scoped, tag = 'internal scratch']
  %s0 = inlined_call_operand.vmem [shape: f32[200,8], index: 0, kind: input, shape index: {}]
  %s1 = inlined_call_operand.vmem [shape: f32[200,16], index: 1, kind: input, shape index: {}]
  %s2 = inlined_call_operand.vmem [shape: f32[200,32], index: 2, kind: input, shape index: {}]
  %s3 = inlined_call_operand.vmem [shape: f32[200,128], index: 3, kind: input, shape index: {}]
  %s4 = inlined_call_operand.vmem [shape: f32[200,184], index: 4, kind: output, shape index: {}]
  %s5 = sld [smem:[#allocation0]]
  $region75: #{tpu_custom_call.1} parent=0
    _
  %s7 = ssub.s32 1, %s5
  %s8 = scalar_select 0, %s7, %s5
  $region1: #{tpu_custom_call.1} parent=0
    #allocation2 [shape = 'u8[98304]{0}', space=vmem, size = 0x18000, scoped, tag = 'output window, operand 0']
    loop: start=0, step=1, limit=7
    $region2: #{tpu_custom_call.1} parent=1 // loop_pre_header
      _
    $region3: #{tpu_custom_call.1} parent=1 // loop_header
      %s10 = sphi 0, %s14
      %p11 = scmp.ge.s32.totalorder %s10, 7
      %s20 = sphi 0, %s22
      %s23 = sphi 0, %s20
      %s24 = sphi 0, %s23
      %s40 = sphi 0, %s24
      %s46 = sphi 0, %s48
      %s49 = sphi 0, %s46
      %s50 = sphi 0, %s49
      %s66 = sphi 0, %s50
      %s72 = sphi 0, %s74
      %s75 = sphi 0, %s72
      %s76 = sphi 0, %s75
      %s92 = sphi 0, %s76
      %s98 = sphi 0, %s100
      %s101 = sphi 0, %s98
      %s102 = sphi 0, %s101
      %s118 = sphi 0, %s102
      %s124 = sphi 0, %s126
      %s127 = sphi 0, %s124
      %s128 = sphi 0, %s127
      %s144 = sphi 0, %s128
    $region4: #{tpu_custom_call.1} parent=1 // loop_header_branch
      %13 = sbr.rel (%p11) target = $region8
    $region5: #{tpu_custom_call.1} parent=1 // loop_body
      %s15 = ssub.s32 %s10, 1
      %s16 = ssub.s32 %s10, 2
      %s17 = sadd.s32 %s10, 1
      %s18 = ssub.s32 %s10, %s17
      %p19 = scmp.eq.s32.totalorder %s18, 0
      %s21 = sadd.s32 %s20, 1
      %s22 = scalar_select %p19, %s20, %s21
      %p25 = pneg %p19
      %p26 = scmp.eq.s32.totalorder %s10, 4
      %p27 = por %p25, %p26
      %p28 = scmp.ne.s32.totalorder %s20, %s23
      %p29 = scmp.eq.s32.totalorder %s10, 0
      %p30 = por %p28, %p29
      %p31 = scmp.ne.s32.totalorder %s20, %s23
      %p32 = scmp.eq.s32.totalorder %s15, 4
      %p33 = por %p31, %p32
      %p34 = scmp.ne.s32.totalorder %s23, %s24
      %p35 = scmp.eq.s32.totalorder %s15, 0
      %p36 = por %p34, %p35
      %p37 = scmp.ne.s32.totalorder %s23, %s24
      %p38 = scmp.eq.s32.totalorder %s16, 4
      %p39 = por %p37, %p38
      %p41 = scmp.ne.s32.totalorder %s24, %s40
      %p42 = scmp.eq.s32.totalorder %s16, 0
      %p43 = por %p41, %p42
      %s44 = ssub.s32 %s10, %s17
      %p45 = scmp.eq.s32.totalorder %s44, 0
      %s47 = sadd.s32 %s46, 1
      %s48 = scalar_select %p45, %s46, %s47
      %p51 = pneg %p45
      %p52 = scmp.eq.s32.totalorder %s10, 4
      %p53 = por %p51, %p52
      %p54 = scmp.ne.s32.totalorder %s46, %s49
      %p55 = scmp.eq.s32.totalorder %s10, 0
      %p56 = por %p54, %p55
      %p57 = scmp.ne.s32.totalorder %s46, %s49
      %p58 = scmp.eq.s32.totalorder %s15, 4
      %p59 = por %p57, %p58
      %p60 = scmp.ne.s32.totalorder %s49, %s50
      %p61 = scmp.eq.s32.totalorder %s15, 0
      %p62 = por %p60, %p61
      %p63 = scmp.ne.s32.totalorder %s49, %s50
      %p64 = scmp.eq.s32.totalorder %s16, 4
      %p65 = por %p63, %p64
      %p67 = scmp.ne.s32.totalorder %s50, %s66
      %p68 = scmp.eq.s32.totalorder %s16, 0
      %p69 = por %p67, %p68
      %s70 = ssub.s32 %s10, %s17
      %p71 = scmp.eq.s32.totalorder %s70, 0
      %s73 = sadd.s32 %s72, 1
      %s74 = scalar_select %p71, %s72, %s73
      %p77 = pneg %p71
      %p78 = scmp.eq.s32.totalorder %s10, 4
      %p79 = por %p77, %p78
      %p80 = scmp.ne.s32.totalorder %s72, %s75
      %p81 = scmp.eq.s32.totalorder %s10, 0
      %p82 = por %p80, %p81
      %p83 = scmp.ne.s32.totalorder %s72, %s75
      %p84 = scmp.eq.s32.totalorder %s15, 4
      %p85 = por %p83, %p84
      %p86 = scmp.ne.s32.totalorder %s75, %s76
      %p87 = scmp.eq.s32.totalorder %s15, 0
      %p88 = por %p86, %p87
      %p89 = scmp.ne.s32.totalorder %s75, %s76
      %p90 = scmp.eq.s32.totalorder %s16, 4
      %p91 = por %p89, %p90
      %p93 = scmp.ne.s32.totalorder %s76, %s92
      %p94 = scmp.eq.s32.totalorder %s16, 0
      %p95 = por %p93, %p94
      %s96 = ssub.s32 %s10, %s17
      %p97 = scmp.eq.s32.totalorder %s96, 0
      %s99 = sadd.s32 %s98, 1
      %s100 = scalar_select %p97, %s98, %s99
      %p103 = pneg %p97
      %p104 = scmp.eq.s32.totalorder %s10, 4
      %p105 = por %p103, %p104
      %p106 = scmp.ne.s32.totalorder %s98, %s101
      %p107 = scmp.eq.s32.totalorder %s10, 0
      %p108 = por %p106, %p107
      %p109 = scmp.ne.s32.totalorder %s98, %s101
      %p110 = scmp.eq.s32.totalorder %s15, 4
      %p111 = por %p109, %p110
      %p112 = scmp.ne.s32.totalorder %s101, %s102
      %p113 = scmp.eq.s32.totalorder %s15, 0
      %p114 = por %p112, %p113
      %p115 = scmp.ne.s32.totalorder %s101, %s102
      %p116 = scmp.eq.s32.totalorder %s16, 4
      %p117 = por %p115, %p116
      %p119 = scmp.ne.s32.totalorder %s102, %s118
      %p120 = scmp.eq.s32.totalorder %s16, 0
      %p121 = por %p119, %p120
      %s122 = ssub.s32 %s10, %s17
      %p123 = scmp.eq.s32.totalorder %s122, 0
      %s125 = sadd.s32 %s124, 1
      %s126 = scalar_select %p123, %s124, %s125
      %p129 = pneg %p123
      %p130 = scmp.eq.s32.totalorder %s10, 4
      %p131 = por %p129, %p130
      %p132 = scmp.ne.s32.totalorder %s124, %s127
      %p133 = scmp.eq.s32.totalorder %s10, 0
      %p134 = por %p132, %p133
      %p135 = scmp.ne.s32.totalorder %s124, %s127
      %p136 = scmp.eq.s32.totalorder %s15, 4
      %p137 = por %p135, %p136
      %p138 = scmp.ne.s32.totalorder %s127, %s128
      %p139 = scmp.eq.s32.totalorder %s15, 0
      %p140 = por %p138, %p139
      %p141 = scmp.ne.s32.totalorder %s127, %s128
      %p142 = scmp.eq.s32.totalorder %s16, 4
      %p143 = por %p141, %p142
      %p145 = scmp.ne.s32.totalorder %s128, %s144
      %p146 = scmp.eq.s32.totalorder %s16, 0
      %p147 = por %p145, %p146
      %p148 = scmp.le.s32.totalorder 1, %s10
      %p149 = scmp.lt.s32.totalorder %s10, 6
      %p150 = pnand %p148, %p149
      %p151 = pneg %p150
      // Predicated region
      $region9: #{tpu_custom_call.1} parent=5 // pred_check
        _
      $region10: #{tpu_custom_call.1} parent=5 // pred_check_branch
        %153 = sbr.rel (%p150) target = $region12
      $region11: #{tpu_custom_call.1} parent=5 // pred_region
        %s154 = ssub.s32 %s10, 1
      $region12: #{tpu_custom_call.1} parent=5 // pred_fallthru
        _
      %p155 = scmp.lt.s32.totalorder %s10, 5
      // Predicated region
      $region13: #{tpu_custom_call.1} parent=5 // pred_check
        %p156 = pneg %p155
      $region14: #{tpu_custom_call.1} parent=5 // pred_check_branch
        %158 = sbr.rel (%p156) target = $region16
      $region15: #{tpu_custom_call.1} parent=5 // pred_region
        // Predicated region
        $region17: #{tpu_custom_call.1} parent=15 // pred_check
          %p159 = pneg %p30
        $region18: #{tpu_custom_call.1} parent=15 // pred_check_branch
          %161 = sbr.rel (%p159) target = $region20
        $region19: #{tpu_custom_call.1} parent=15 // pred_region
          %s162 = smul.u32 6, %s10
          %s163 = ssub.s32 25, %s162
          %p164 = scmp.lt.s32.totalorder %s163, 6
          %s165 = scalar_select %p164, %s163, 6
          %s166 = smul.u32 128, %s165
          %p167 = scmp.lt.s32.totalorder %s162, 24
          %s168 = scalar_select %p167, %s162, 24
          %s169 = smul.addr %s168, 8
          %s170 = scalar_lea.vmem %s0, %s169
          %s171 = smul.u32 6, %s10
          %s172 = ssub.s32 25, %s171
          %p173 = scmp.lt.s32.totalorder %s172, 6
          %s174 = scalar_select %p173, %s172, 6
          %s175 = smul.u32 128, %s174
        $region20: #{tpu_custom_call.1} parent=15 // pred_fallthru
          _
        // Predicated region
        $region21: #{tpu_custom_call.1} parent=15 // pred_check
          %p176 = pneg %p56
        $region22: #{tpu_custom_call.1} parent=15 // pred_check_branch
          %178 = sbr.rel (%p176) target = $region24
        $region23: #{tpu_custom_call.1} parent=15 // pred_region
          %s179 = smul.u32 6, %s10
          %s180 = ssub.s32 25, %s179
          %p181 = scmp.lt.s32.totalorder %s180, 6
          %s182 = scalar_select %p181, %s180, 6
          %s183 = smul.u32 128, %s182
          %p184 = scmp.lt.s32.totalorder %s179, 24
          %s185 = scalar_select %p184, %s179, 24
          %s186 = smul.addr %s185, 8
          %s187 = scalar_lea.vmem %s1, %s186
          %s188 = smul.u32 6, %s10
          %s189 = ssub.s32 25, %s188
          %p190 = scmp.lt.s32.totalorder %s189, 6
          %s191 = scalar_select %p190, %s189, 6
          %s192 = smul.u32 128, %s191
        $region24: #{tpu_custom_call.1} parent=15 // pred_fallthru
          _
        // Predicated region
        $region25: #{tpu_custom_call.1} parent=15 // pred_check
          %p193 = pneg %p82
        $region26: #{tpu_custom_call.1} parent=15 // pred_check_branch
          %195 = sbr.rel (%p193) target = $region28
        $region27: #{tpu_custom_call.1} parent=15 // pred_region
          %s196 = smul.u32 6, %s10
          %s197 = ssub.s32 25, %s196
          %p198 = scmp.lt.s32.totalorder %s197, 6
          %s199 = scalar_select %p198, %s197, 6
          %s200 = smul.u32 128, %s199
          %p201 = scmp.lt.s32.totalorder %s196, 24
          %s202 = scalar_select %p201, %s196, 24
          %s203 = smul.addr %s202, 8
          %s204 = scalar_lea.vmem %s2, %s203
          %s205 = smul.u32 6, %s10
          %s206 = ssub.s32 25, %s205
          %p207 = scmp.lt.s32.totalorder %s206, 6
          %s208 = scalar_select %p207, %s206, 6
          %s209 = smul.u32 128, %s208
        $region28: #{tpu_custom_call.1} parent=15 // pred_fallthru
          _
        // Predicated region
        $region29: #{tpu_custom_call.1} parent=15 // pred_check
          %p210 = pneg %p108
        $region30: #{tpu_custom_call.1} parent=15 // pred_check_branch
          %212 = sbr.rel (%p210) target = $region32
        $region31: #{tpu_custom_call.1} parent=15 // pred_region
          %s213 = smul.u32 6, %s10
          %s214 = ssub.s32 25, %s213
          %p215 = scmp.lt.s32.totalorder %s214, 6
          %s216 = scalar_select %p215, %s214, 6
          %s217 = smul.u32 128, %s216
          %p218 = scmp.lt.s32.totalorder %s213, 24
          %s219 = scalar_select %p218, %s213, 24
          %s220 = smul.addr %s219, 8
          %s221 = scalar_lea.vmem %s3, %s220
          %s222 = smul.u32 6, %s10
          %s223 = ssub.s32 25, %s222
          %p224 = scmp.lt.s32.totalorder %s223, 6
          %s225 = scalar_select %p224, %s223, 6
          %s226 = smul.u32 128, %s225
        $region32: #{tpu_custom_call.1} parent=15 // pred_fallthru
          _
      $region16: #{tpu_custom_call.1} parent=5 // pred_fallthru
        _
      %p227 = scmp.le.s32.totalorder 1, %s10
      %p228 = scmp.lt.s32.totalorder %s10, 6
      %p229 = pnand %p227, %p228
      %p230 = pneg %p229
      // Predicated region
      $region33: #{tpu_custom_call.1} parent=5 // pred_check
        _
      $region34: #{tpu_custom_call.1} parent=5 // pred_check_branch
        %232 = sbr.rel (%p229) target = $region36
      $region35: #{tpu_custom_call.1} parent=5 // pred_region
        %s233 = ssub.s32 %s10, 1
        %s234 = smul.u32 6, %s15
        %s235 = ssub.s32 25, %s234
        %p236 = scmp.lt.s32.totalorder %s235, 6
        %s237 = scalar_select %p236, %s235, 6
        %s238 = smul.u32 128, %s237
        %p239 = scmp.lt.s32.totalorder %s234, 24
        %s240 = scalar_select %p239, %s234, 24
        %s241 = smul.addr %s240, 8
        %s242 = scalar_lea.vmem %s0, %s241
        %p243 = pneg %p36
        %p244 = pneg %p33
        %s245 = smul.u32 6, %s15
        %s246 = ssub.s32 25, %s245
        %p247 = scmp.lt.s32.totalorder %s246, 6
        %s248 = scalar_select %p247, %s246, 6
        %s249 = smul.u32 128, %s248
        %p250 = scmp.lt.s32.totalorder %s245, 24
        %s251 = scalar_select %p250, %s245, 24
        %s252 = smul.addr %s251, 8
        %s253 = scalar_lea.vmem %s1, %s252
        %p254 = pneg %p62
        %p255 = pneg %p59
        %s256 = smul.u32 6, %s15
        %s257 = ssub.s32 25, %s256
        %p258 = scmp.lt.s32.totalorder %s257, 6
        %s259 = scalar_select %p258, %s257, 6
        %s260 = smul.u32 128, %s259
        %p261 = scmp.lt.s32.totalorder %s256, 24
        %s262 = scalar_select %p261, %s256, 24
        %s263 = smul.addr %s262, 8
        %s264 = scalar_lea.vmem %s2, %s263
        %p265 = pneg %p88
        %p266 = pneg %p85
        %s267 = smul.u32 6, %s15
        %s268 = ssub.s32 25, %s267
        %p269 = scmp.lt.s32.totalorder %s268, 6
        %s270 = scalar_select %p269, %s268, 6
        %s271 = smul.u32 128, %s270
        %p272 = scmp.lt.s32.totalorder %s267, 24
        %s273 = scalar_select %p272, %s267, 24
        %s274 = smul.addr %s273, 8
        %s275 = scalar_lea.vmem %s3, %s274
        %p276 = pneg %p114
        %p277 = pneg %p111
        %p278 = pneg %p140
        %p279 = pneg %p137
        %s280 = sand.u32 %s127, 1
        %s281 = sand.u32 %s127, 1
        %s282 = smul.addr %s281, 96
        %s283 = scalar_lea.vmem [#allocation2], %s282
        %s284 = smul.u32 6, %s15
        %s285 = ssub.s32 25, %s284
        %p286 = scmp.lt.s32.totalorder %s285, 6
        %s287 = scalar_select %p286, %s285, 6
        %s288 = smul.u32 128, %s287
        %p289 = scmp.lt.s32.totalorder %s284, 24
        %s290 = scalar_select %p289, %s284, 24
        %s291 = smul.addr %s290, 8
        %s292 = scalar_lea.vmem %s0, %s291
        %s293 = smul.u32 6, %s15
        %s294 = ssub.s32 25, %s293
        %p295 = scmp.lt.s32.totalorder %s294, 6
        %s296 = scalar_select %p295, %s294, 6
        %s297 = smul.u32 128, %s296
        %s298 = smul.u32 6, %s15
        %s299 = ssub.s32 25, %s298
        %p300 = scmp.lt.s32.totalorder %s299, 6
        %s301 = scalar_select %p300, %s299, 6
        %s302 = smul.u32 128, %s301
        %p303 = scmp.lt.s32.totalorder %s298, 24
        %s304 = scalar_select %p303, %s298, 24
        %s305 = smul.addr %s304, 8
        %s306 = scalar_lea.vmem %s1, %s305
        %s307 = smul.u32 6, %s15
        %s308 = ssub.s32 25, %s307
        %p309 = scmp.lt.s32.totalorder %s308, 6
        %s310 = scalar_select %p309, %s308, 6
        %s311 = smul.u32 128, %s310
        %s312 = smul.u32 6, %s15
        %s313 = ssub.s32 25, %s312
        %p314 = scmp.lt.s32.totalorder %s313, 6
        %s315 = scalar_select %p314, %s313, 6
        %s316 = smul.u32 128, %s315
        %p317 = scmp.lt.s32.totalorder %s312, 24
        %s318 = scalar_select %p317, %s312, 24
        %s319 = smul.addr %s318, 8
        %s320 = scalar_lea.vmem %s2, %s319
        %s321 = smul.u32 6, %s15
        %s322 = ssub.s32 25, %s321
        %p323 = scmp.lt.s32.totalorder %s322, 6
        %s324 = scalar_select %p323, %s322, 6
        %s325 = smul.u32 128, %s324
        %s326 = smul.u32 6, %s15
        %s327 = ssub.s32 25, %s326
        %p328 = scmp.lt.s32.totalorder %s327, 6
        %s329 = scalar_select %p328, %s327, 6
        %s330 = smul.u32 128, %s329
        %p331 = scmp.lt.s32.totalorder %s326, 24
        %s332 = scalar_select %p331, %s326, 24
        %s333 = smul.addr %s332, 8
        %s334 = scalar_lea.vmem %s3, %s333
        %s335 = smul.u32 6, %s15
        %s336 = ssub.s32 25, %s335
        %p337 = scmp.lt.s32.totalorder %s336, 6
        %s338 = scalar_select %p337, %s336, 6
        %s339 = smul.u32 128, %s338
        %s340 = smul.u32 6, %s15
        %s341 = ssub.s32 25, %s340
        %p342 = scmp.lt.s32.totalorder %s341, 6
        %s343 = scalar_select %p342, %s341, 6
        %s344 = smul.u32 128, %s343
        %s345 = smul.u32 %s344, 2
        %v346 = vld [vmem:[%s292] sm:$0xff]
        %v347 = vld [vmem:[%s292 + $0x8] sm:$0xff]
        %v348 = vld [vmem:[%s292 + $0x10] sm:$0xff]
        %v349 = vld [vmem:[%s292 + $0x18] sm:$0xff]
        %v350 = vld [vmem:[%s292 + $0x20] sm:$0xff]
        %v351 = vld [vmem:[%s292 + $0x28] sm:$0xff]
        %v352 = vld [vmem:[%s306] sm:$0xff]
        %v353 = vld [vmem:[%s306 + $0x8] sm:$0xff]
        %v354 = vld [vmem:[%s306 + $0x10] sm:$0xff]
        %v355 = vld [vmem:[%s306 + $0x18] sm:$0xff]
        %v356 = vld [vmem:[%s306 + $0x20] sm:$0xff]
        %v357 = vld [vmem:[%s306 + $0x28] sm:$0xff]
        %v358 = vld [vmem:[%s320] sm:$0xff]
        %v359 = vld [vmem:[%s320 + $0x8] sm:$0xff]
        %v360 = vld [vmem:[%s320 + $0x10] sm:$0xff]
        %v361 = vld [vmem:[%s320 + $0x18] sm:$0xff]
        %v362 = vld [vmem:[%s320 + $0x20] sm:$0xff]
        %v363 = vld [vmem:[%s320 + $0x28] sm:$0xff]
        %v364 = vld [vmem:[%s334] sm:$0xff]
        %v365 = vld [vmem:[%s334 + $0x8] sm:$0xff]
        %v366 = vld [vmem:[%s334 + $0x10] sm:$0xff]
        %v367 = vld [vmem:[%s334 + $0x18] sm:$0xff]
        %v368 = vld [vmem:[%s334 + $0x20] sm:$0xff]
        %v369 = vld [vmem:[%s334 + $0x28] sm:$0xff]
        %376 = vrot.lane.b32.xlu0 %v352, 8
        %v377 = vpop.permute.xlu0 %376
        %378 = vrot.lane.b32.xlu0 %v353, 8
        %v379 = vpop.permute.xlu0 %378
        %380 = vrot.lane.b32.xlu0 %v354, 8
        %v381 = vpop.permute.xlu0 %380
        %382 = vrot.lane.b32.xlu0 %v355, 8
        %v383 = vpop.permute.xlu0 %382
        %384 = vrot.lane.b32.xlu0 %v356, 8
        %v385 = vpop.permute.xlu0 %384
        %386 = vrot.lane.b32.xlu0 %v357, 8
        %v387 = vpop.permute.xlu0 %386
        %400 = vrot.lane.b32.xlu0 %v358, 24
        %v401 = vpop.permute.xlu0 %400
        %402 = vrot.lane.b32.xlu0 %v359, 24
        %v403 = vpop.permute.xlu0 %402
        %404 = vrot.lane.b32.xlu0 %v360, 24
        %v405 = vpop.permute.xlu0 %404
        %406 = vrot.lane.b32.xlu0 %v361, 24
        %v407 = vpop.permute.xlu0 %406
        %408 = vrot.lane.b32.xlu0 %v362, 24
        %v409 = vpop.permute.xlu0 %408
        %410 = vrot.lane.b32.xlu0 %v363, 24
        %v411 = vpop.permute.xlu0 %410
        %424 = vrot.lane.b32.xlu0 %v364, 56
        %v425 = vpop.permute.xlu0 %424
        %426 = vrot.lane.b32.xlu0 %v365, 56
        %v427 = vpop.permute.xlu0 %426
        %428 = vrot.lane.b32.xlu0 %v366, 56
        %v429 = vpop.permute.xlu0 %428
        %430 = vrot.lane.b32.xlu0 %v367, 56
        %v431 = vpop.permute.xlu0 %430
        %432 = vrot.lane.b32.xlu0 %v368, 56
        %v433 = vpop.permute.xlu0 %432
        %434 = vrot.lane.b32.xlu0 %v369, 56
        %v435 = vpop.permute.xlu0 %434
        %vm442 = vcmask 64512
        %v443 = vsel %vm442, %v346, %v377
        %v444 = vsel %vm442, %v347, %v379
        %v445 = vsel %vm442, %v348, %v381
        %v446 = vsel %vm442, %v349, %v383
        %v447 = vsel %vm442, %v350, %v385
        %v448 = vsel %vm442, %v351, %v387
        %vm449 = vcmask 195584
        %v450 = vsel %vm449, %v443, %v401
        %v451 = vsel %vm449, %v444, %v403
        %v452 = vsel %vm449, %v445, %v405
        %v453 = vsel %vm449, %v446, %v407
        %v454 = vsel %vm449, %v447, %v409
        %v455 = vsel %vm449, %v448, %v411
        %vm456 = vcmask 457728
        %v457 = vsel %vm456, %v450, %v425
        %v458 = vsel %vm456, %v451, %v427
        %v459 = vsel %vm456, %v452, %v429
        %v460 = vsel %vm456, %v453, %v431
        %v461 = vsel %vm456, %v454, %v433
        %v462 = vsel %vm456, %v455, %v435
        %463 = vst [vmem:[%s283] sm:$0xff] %v457
        %464 = vst.msk [vmem:[%s283 + $0x8] sm:$0xff] %vm456, %v425
        %465 = vst [vmem:[%s283 + $0x10] sm:$0xff] %v458
        %466 = vst.msk [vmem:[%s283 + $0x18] sm:$0xff] %vm456, %v427
        %467 = vst [vmem:[%s283 + $0x20] sm:$0xff] %v459
        %468 = vst.msk [vmem:[%s283 + $0x28] sm:$0xff] %vm456, %v429
        %469 = vst [vmem:[%s283 + $0x30] sm:$0xff] %v460
        %470 = vst.msk [vmem:[%s283 + $0x38] sm:$0xff] %vm456, %v431
        %471 = vst [vmem:[%s283 + $0x40] sm:$0xff] %v461
        %472 = vst.msk [vmem:[%s283 + $0x48] sm:$0xff] %vm456, %v433
        %473 = vst [vmem:[%s283 + $0x50] sm:$0xff] %v462
        %474 = vst.msk [vmem:[%s283 + $0x58] sm:$0xff] %vm456, %v435
        %s475 = sand.u32 %s127, 1
        %s476 = sand.u32 %s127, 1
        %s477 = smul.addr %s476, 96
        %s478 = scalar_lea.vmem [#allocation2], %s477
        // Predicated region
        $region37: #{tpu_custom_call.1} parent=35 // pred_check
          %p479 = pneg %p137
        $region38: #{tpu_custom_call.1} parent=35 // pred_check_branch
          %481 = sbr.rel (%p479) target = $region40
        $region39: #{tpu_custom_call.1} parent=35 // pred_region
          %s482 = smul.u32 6, %s15
          %s483 = ssub.s32 25, %s482
          %p484 = scmp.lt.s32.totalorder %s483, 6
          %s485 = scalar_select %p484, %s483, 6
          %s486 = smul.u32 128, %s485
          %s487 = smul.u32 %s486, 2
          %p488 = scmp.ne.s32.totalorder 0, %s487
          %s489 = smul.addr %s482, 2
          %s490 = smul.addr %s489, 8
          %s491 = scalar_lea.vmem %s4, %s490
          // Predicated region
          $region41: #{tpu_custom_call.1} parent=39 // pred_check
            %p492 = pneg %p488
          $region42: #{tpu_custom_call.1} parent=39 // pred_check_branch
            %494 = sbr.rel (%p492) target = $region44
          $region43: #{tpu_custom_call.1} parent=39 // pred_region
            // Predicated region
            $region45: #{tpu_custom_call.1} parent=43 // pred_check
              _
            $region46: #{tpu_custom_call.1} parent=43 // pred_check_branch
              %496 = sbr.rel (0) target = $region48
            $region47: #{tpu_custom_call.1} parent=43 // pred_region
              %s497 = sdiv.u32.pop %s485, 6
              %s498 = srem.u32.pop %s485, 6
              // While loop
              $region49: #{tpu_custom_call.1} parent=47 // loop_pre_header
                _
              $region50: #{tpu_custom_call.1} parent=47 // loop_header
                %s500 = sphi 0, %s502
                %p501 = scmp.ge.s32.totalorder %s500, %s497
                %s505 = sphi 0, %s534
                %s506 = sphi %s478, %s537
                %s507 = sphi %s491, %s538
              $region51: #{tpu_custom_call.1} parent=47 // loop_header_branch
                %504 = sbr.rel (%p501) target = $region55
              $region52: #{tpu_custom_call.1} parent=47 // loop_body
                %v508 = vld [vmem:[%s506] sm:$0xff]
                %509 = vst [vmem:[%s507] sm:$0xff] %v508
                %v510 = vld [vmem:[%s506 + $0x10] sm:$0xff]
                %511 = vst [vmem:[%s507 + $0x10] sm:$0xff] %v510
                %v512 = vld [vmem:[%s506 + $0x20] sm:$0xff]
                %513 = vst [vmem:[%s507 + $0x20] sm:$0xff] %v512
                %v514 = vld [vmem:[%s506 + $0x30] sm:$0xff]
                %515 = vst [vmem:[%s507 + $0x30] sm:$0xff] %v514
                %v516 = vld [vmem:[%s506 + $0x40] sm:$0xff]
                %517 = vst [vmem:[%s507 + $0x40] sm:$0xff] %v516
                %v518 = vld [vmem:[%s506 + $0x50] sm:$0xff]
                %519 = vst [vmem:[%s507 + $0x50] sm:$0xff] %v518
                %v520 = vld [vmem:[%s506 + $0x8] sm:$0xff]
                %521 = vst [vmem:[%s507 + $0x8] sm:$0xff] %v520
                %v522 = vld [vmem:[%s506 + $0x18] sm:$0xff]
                %523 = vst [vmem:[%s507 + $0x18] sm:$0xff] %v522
                %v524 = vld [vmem:[%s506 + $0x28] sm:$0xff]
                %525 = vst [vmem:[%s507 + $0x28] sm:$0xff] %v524
                %v526 = vld [vmem:[%s506 + $0x38] sm:$0xff]
                %527 = vst [vmem:[%s507 + $0x38] sm:$0xff] %v526
                %v528 = vld [vmem:[%s506 + $0x48] sm:$0xff]
                %529 = vst [vmem:[%s507 + $0x48] sm:$0xff] %v528
                %v530 = vld [vmem:[%s506 + $0x58] sm:$0xff]
                %531 = vst [vmem:[%s507 + $0x58] sm:$0xff] %v530
                %s532 = sadd.s32 1, %s505
                %p533 = scmp.ge.s32.totalorder %s532, %s497
                %s534 = scalar_select %p533, 0, %s532
                %s535 = smul.u32 %s534, 96
                %s536 = smul.u32 %s534, 96
                %s537 = scalar_lea.vmem %s478, %s535 [#allocation2]
                %s538 = scalar_lea.vmem %s491, %s536
              $region53: #{tpu_custom_call.1} parent=47 // loop_footer
                %s502 = sadd.s32 %s500, 1
              $region54: #{tpu_custom_call.1} parent=47 // loop_footer_branch
                %499 = sbr.rel target = $region50
              $region55: #{tpu_custom_call.1} parent=47 // loop_exit
                _
              %s539 = sdiv.u32.pop %s485, 6
              %s540 = srem.u32.pop %s485, 6
              %s541 = smul.u32 %s539, 6
              %s542 = smul.u32 16, %s541
              %s543 = scalar_lea.vmem %s478, %s542 [#allocation2]
              %s544 = smul.u32 16, %s541
              %s545 = scalar_lea.vmem %s491, %s544
              // While loop
              $region56: #{tpu_custom_call.1} parent=47 // loop_pre_header
                _
              $region57: #{tpu_custom_call.1} parent=47 // loop_header
                %s547 = sphi 0, %s549
                %p548 = scmp.ge.s32.totalorder %s547, %s540
                %s552 = sphi 0, %s561
                %s553 = sphi %s543, %s564
                %s554 = sphi %s545, %s565
              $region58: #{tpu_custom_call.1} parent=47 // loop_header_branch
                %551 = sbr.rel (%p548) target = $region62
              $region59: #{tpu_custom_call.1} parent=47 // loop_body
                %v555 = vld [vmem:[%s553] sm:$0xff]
                %556 = vst [vmem:[%s554] sm:$0xff] %v555
                %v557 = vld [vmem:[%s553 + $0x8] sm:$0xff]
                %558 = vst [vmem:[%s554 + $0x8] sm:$0xff] %v557
                %s559 = sadd.s32 1, %s552
                %p560 = scmp.ge.s32.totalorder %s559, %s540
                %s561 = scalar_select %p560, 0, %s559
                %s562 = smul.u32 %s561, 16
                %s563 = smul.u32 %s561, 16
                %s564 = scalar_lea.vmem %s543, %s562 [#allocation2]
                %s565 = scalar_lea.vmem %s545, %s563
              $region60: #{tpu_custom_call.1} parent=47 // loop_footer
                %s549 = sadd.s32 %s547, 1
              $region61: #{tpu_custom_call.1} parent=47 // loop_footer_branch
                %546 = sbr.rel target = $region57
              $region62: #{tpu_custom_call.1} parent=47 // loop_exit
                _
            $region48: #{tpu_custom_call.1} parent=43 // pred_fallthru
              _
            // Predicated region
            $region63: #{tpu_custom_call.1} parent=43 // pred_check
              _
            $region64: #{tpu_custom_call.1} parent=43 // pred_check_branch
              %567 = sbr.rel target = $region66
            $region65: #{tpu_custom_call.1} parent=43 // pred_region
              _
            $region66: #{tpu_custom_call.1} parent=43 // pred_fallthru
              _
          $region44: #{tpu_custom_call.1} parent=39 // pred_fallthru
            _
          %568 = vnop
        $region40: #{tpu_custom_call.1} parent=35 // pred_fallthru
          _
      $region36: #{tpu_custom_call.1} parent=5 // pred_fallthru
        _
      %p569 = scmp.le.s32.totalorder 2, %s10
      // Predicated region
      $region67: #{tpu_custom_call.1} parent=5 // pred_check
        %p570 = pneg %p569
      $region68: #{tpu_custom_call.1} parent=5 // pred_check_branch
        %572 = sbr.rel (%p570) target = $region70
      $region69: #{tpu_custom_call.1} parent=5 // pred_region
        %s573 = ssub.s32 %s10, 2
        // Predicated region
        $region71: #{tpu_custom_call.1} parent=69 // pred_check
          %p574 = pneg %p143
        $region72: #{tpu_custom_call.1} parent=69 // pred_check_branch
          %576 = sbr.rel (%p574) target = $region74
        $region73: #{tpu_custom_call.1} parent=69 // pred_region
          %s577 = sand.u32 %s128, 1
          %s578 = sand.u32 %s128, 1
          %s579 = smul.addr %s578, 96
          %s580 = scalar_lea.vmem [#allocation2], %s579
        $region74: #{tpu_custom_call.1} parent=69 // pred_fallthru
          _
      $region70: #{tpu_custom_call.1} parent=5 // pred_fallthru
        _
    $region6: #{tpu_custom_call.1} parent=1 // loop_footer
      %s14 = sadd.s32 1, %s10
    $region7: #{tpu_custom_call.1} parent=1 // loop_footer_branch
      %9 = sbr.rel target = $region3
    $region8: #{tpu_custom_call.1} parent=1 // loop_exit
      _

</llo_original>
